<compile_context>
chip_gen: v6e
topology: v6e:2x2x1
jax: 0.10.0
libtpu: 0.0.40
codegen_flags: <defaults>
</compile_context>

<pallas_src>
import math
import functools

import jax
import jax.numpy as jnp
from jax.experimental import pallas as pl
from jax.experimental.pallas import tpu as pltpu


def _cdiv(a, b):
    return (a + b - 1) // b


def _curricular_kernel(flags_ref, x_ref, w_ref, cf_ref, label_ref, t_ref,
                       out_ref, *, s, tc, chunk, compute_dtype):
    """Produce one (tb, tc) logits tile.

    flags_ref : (n_ct*n_bt,) int32 SMEM (scalar prefetch): 1 iff this
                (class tile, batch tile) pair contains at least one label.
    x_ref     : (tb, E)  x with the weight row-norm folded in, compute dtype
    w_ref     : (E, tc)  raw weight tile (original parameter dtype)
    cf_ref    : (tb, 2)  f32 columns: [cos_theta_m, final_target_logit]
    label_ref : (tb, 1)  int32 labels
    t_ref     : (1, 1)   f32 SMEM: updated buffer t
    out_ref   : (tb, tc) output logits tile
    """
    j = pl.program_id(0)                     # class-tile index (outer axis)
    i = pl.program_id(1)                     # batch-tile index (inner axis)
    n_bt = pl.num_programs(1)

    x = x_ref[...]                           # (tb, E), compute dtype
    cf = cf_ref[...]
    ctm = cf[:, 0:1]                         # cos(theta + m)       (tb, 1)
    ftl = cf[:, 1:2]                         # final target logit   (tb, 1)
    t = t_ref[0, 0]                          # scalar t from SMEM

    # Chunked class tile: MXU work on chunk c+1 overlaps the VPU epilogue of chunk c.
    for c in range(tc // chunk):
        c0 = c * chunk
        w = w_ref[:, c0:c0 + chunk]
        if w.dtype != compute_dtype:
            w = w.astype(compute_dtype)      # per-tile cast, no HBM copy of the weight
        cos = jnp.dot(x, w, preferred_element_type=jnp.float32)
        cos = jnp.clip(cos, -1.0, 1.0)
        # Hard-example reweighting: cos -> cos*(t+cos) where cos > cos_theta_m.
        modified = jnp.where(cos > ctm, cos * (t + cos), cos)
        out_ref[:, c0:c0 + chunk] = (modified * s).astype(out_ref.dtype)

    # scatter_(1, label, final_target_logit): only for tiles that actually hold a
    # label of this batch tile (most class tiles skip this when C >> B).
    @pl.when(flags_ref[j * n_bt + i] != 0)
    def _():
        lane = jax.lax.broadcasted_iota(jnp.int32, (label_ref.shape[0], tc), 1)
        is_label = lane == (label_ref[...] - j * tc)
        out_ref[...] = jnp.where(is_label,
                                 (ftl * s).astype(out_ref.dtype),
                                 out_ref[...])


def curricular_face(x, label, kernel, t, *, s=64.0, m=0.5,
                    tc=512, tb=None, chunk=256,
                    compute_dtype=jnp.bfloat16, out_dtype=jnp.float32):
    """CurricularFace forward. Returns (output_logits (B, C), updated_t)."""
    B, E = x.shape
    E2, C = kernel.shape
    assert E == E2

    cos_m, sin_m = math.cos(m), math.sin(m)
    threshold = math.cos(math.pi - m)
    mm = math.sin(math.pi - m) * m

    kernel_f32 = kernel if kernel.dtype == jnp.float32 else kernel.astype(jnp.float32)
    x_f32 = x if x.dtype == jnp.float32 else x.astype(jnp.float32)

    # F.normalize(kernel) (PyTorch default dim=1, eps=1e-12) divides each E-row of
    # the (E, C) kernel by its L2 norm over classes. Folded into x:
    #     x @ (kernel / rownorm) == (x * inv_rownorm^T) @ kernel
    # so the Pallas kernel reads the RAW weight (no normalized copy in HBM).
    inv_row_norm = 1.0 / jnp.maximum(
        jnp.linalg.norm(kernel_f32, axis=1, keepdims=True), 1e-12)       # (E, 1)
    x_scaled = (x_f32 * inv_row_norm.T).astype(compute_dtype)            # (B, E)

    # Per-row target logit with the same quantization as the in-kernel matmul
    # (operands in compute_dtype, f32 accumulation).
    w_sel = kernel_f32[:, label].astype(compute_dtype).astype(jnp.float32)  # (E, B)
    target_logit = jnp.clip(
        jnp.sum(x_scaled.astype(jnp.float32) * w_sel.T, axis=1, keepdims=True),
        -1.0, 1.0)                                                       # (B, 1)
    sin_theta = jnp.sqrt(jnp.maximum(1.0 - target_logit ** 2, 0.0))
    cos_theta_m = target_logit * cos_m - sin_theta * sin_m
    final_target_logit = jnp.where(target_logit > threshold,
                                   cos_theta_m, target_logit - mm)

    # Buffer update (world_size == 1): t = mean(target_logit)*0.01 + 0.99*t
    t_new = jnp.mean(target_logit) * 0.01 + 0.99 * jnp.asarray(t, jnp.float32).reshape(())

    cf = jnp.concatenate([cos_theta_m, final_target_logit], axis=1)      # (B, 2) f32
    label2d = label.astype(jnp.int32).reshape(B, 1)
    t_smem = jnp.asarray(t_new, jnp.float32).reshape(1, 1)

    # ---- tiling ----------------------------------------------------------
    tc = max(128, (int(tc) // 128) * 128)        # lane-dense class tile
    if C <= tc:
        tc = C                                   # single class tile (full dim is legal)
    chunk = max(128, (int(chunk) // 128) * 128)  # 128-lane-aligned epilogue chunks

    if tb is None:
        tb = B if B <= 512 else 256
    tb = min(int(tb), B)
    if B % tb != 0 or (tb < B and tb % 8 != 0):
        tb = B                                   # TODO(synk): ragged batch tiling

    w_bytes = jnp.dtype(kernel.dtype).itemsize
    cd = jnp.dtype(compute_dtype).itemsize
    od = jnp.dtype(out_dtype).itemsize

    def _chunk_for(tc_):
        return chunk if (chunk < tc_ and tc_ % chunk == 0) else tc_

    def _footprint(tb_, tc_):
        ck = _chunk_for(tc_)
        return (2 * tb_ * E * cd                 # x block, double-buffered
                + 2 * E * tc_ * w_bytes          # raw weight tile, double-buffered
                + 2 * tb_ * tc_ * od             # output tile, double-buffered
                + 4 * tb_ * 3 * 4                # cf + label blocks
                + E * ck * cd                    # in-kernel weight-cast chunk
                + 6 * tb_ * ck * 4               # f32 epilogue temporaries per chunk
                + tb_ * tc_ * 4)                 # scatter read-modify-write temporary

    try:
        info = pltpu.get_tpu_info()
        vmem_cap = int(getattr(info, "vmem_capacity_bytes", 64 * 1024 * 1024))
    except Exception:
        vmem_cap = 64 * 1024 * 1024              # v7x floor
    budget = int(0.70 * vmem_cap)

    # Shrink the class tile if the double-buffered footprint overshoots (v7x: 64 MiB).
    while tc > 256 and tc % 256 == 0 and _footprint(tb, tc) > budget:
        tc //= 2

    chunk_final = _chunk_for(tc)
    need = _footprint(tb, tc)
    vmem_limit = max(16 * 1024 * 1024, need + (2 << 20))
    vmem_limit = int(min(vmem_limit, max(budget, need + (1 << 20))))

    n_ct = _cdiv(C, tc)                          # ragged last tile handled by Pallas
    n_bt = B // tb
    grid = (n_ct, n_bt)                          # class OUTER, batch INNER -> weight
                                                 # tile resident across inner steps

    # Scalar-prefetched flag table: does (class tile j, batch tile i) hold a label?
    lab_ct = label.astype(jnp.int32) // tc
    row_bt = jnp.arange(B, dtype=jnp.int32) // tb
    flags = jnp.zeros((n_ct * n_bt,), jnp.int32).at[lab_ct * n_bt + row_bt].set(1)

    out = pl.pallas_call(
        functools.partial(_curricular_kernel, s=float(s), tc=tc,
                          chunk=chunk_final, compute_dtype=compute_dtype),
        out_shape=jax.ShapeDtypeStruct((B, C), out_dtype),
        grid_spec=pltpu.PrefetchScalarGridSpec(
            num_scalar_prefetch=1,
            grid=grid,
            in_specs=[
                pl.BlockSpec((tb, E), lambda j, i, flags: (i, 0)),   # x (norm folded)
                pl.BlockSpec((E, tc), lambda j, i, flags: (0, j)),   # raw weight tile
                # TODO(synk): pipeline_mode=pl.Buffered(3) on the weight spec if xprof
                # shows exposed DMA at class-tile boundaries.
                pl.BlockSpec((tb, 2), lambda j, i, flags: (i, 0)),   # [ctm, ftl] f32
                pl.BlockSpec((tb, 1), lambda j, i, flags: (i, 0)),   # label int32
                pl.BlockSpec(memory_space=pltpu.MemorySpace.SMEM),   # t scalar
            ],
            out_specs=pl.BlockSpec((tb, tc), lambda j, i, flags: (i, j)),
        ),
        compiler_params=pltpu.CompilerParams(
            dimension_semantics=("parallel", "arbitrary"),   # class axis carries megacore
            vmem_limit_bytes=vmem_limit),
    )(flags, x_scaled, kernel, cf, label2d, t_smem)

    return out, t_new


def _reference(x, label, kernel, t, s=64.0, m=0.5, compute_dtype=jnp.float32):
    """Pure-JAX transcription of the PyTorch forward (row-norm folded into x;
    compute_dtype mirrors the kernel's optional bf16 matmul quantization)."""
    cos_m, sin_m = math.cos(m), math.sin(m)
    threshold = math.cos(math.pi - m)
    mm = math.sin(math.pi - m) * m
    kernel = kernel.astype(jnp.float32)
    inv = 1.0 / jnp.maximum(jnp.linalg.norm(kernel, axis=1, keepdims=True), 1e-12)
    xs = (x.astype(jnp.float32) * inv.T).astype(compute_dtype)
    w = kernel.astype(compute_dtype)
    cos = jnp.clip(jnp.matmul(xs, w, preferred_element_type=jnp.float32), -1.0, 1.0)
    B = x.shape[0]
    tl = cos[jnp.arange(B), label][:, None]
    st = jnp.sqrt(jnp.maximum(1.0 - tl ** 2, 0.0))
    ctm = tl * cos_m - st * sin_m
    mask = cos > ctm
    ftl = jnp.where(tl > threshold, ctm, tl - mm)
    t_new = jnp.mean(tl) * 0.01 + 0.99 * jnp.asarray(t, jnp.float32).reshape(())
    cos = jnp.where(mask, cos * (t_new + cos), cos)
    cos = cos.at[jnp.arange(B), label].set(ftl[:, 0])
    return cos * s, t_new


if __name__ == "__main__":
    key = jax.random.PRNGKey(0)
    kx, kw = jax.random.split(key, 2)

    # Small but multi-tile shapes: batch=16, embedding=32, classes=512.
    B, E, C = 16, 32, 512
    x = jax.random.normal(kx, (B, E), dtype=jnp.float32)
    weight = 0.01 * jax.random.normal(kw, (E, C), dtype=jnp.float32)   # init std=0.01
    # Batch tile 0 (rows 0-7) hits both class tiles; batch tile 1 (rows 8-15) only
    # hits class tile 0 -> exercises the flag-gated scatter skip path.
    label = jnp.array([3, 130, 255, 256, 300, 511, 0, 64,
                       7, 129, 200, 77, 33, 99, 5, 250], dtype=jnp.int32)
    t0 = jnp.zeros((), dtype=jnp.float32)                              # buffer 't'

    # 1) Default bf16-matmul path: 2x2 grid (class tiles x batch tiles), 2 epilogue
    #    chunks per class tile.
    out, t_new = curricular_face(x, label, weight, t0, tc=256, tb=8, chunk=128)
    out = jax.block_until_ready(out)
    ref, t_ref = _reference(x, label, weight, t0, compute_dtype=jnp.bfloat16)
    assert out.shape == (B, C)
    assert jnp.allclose(out, ref, rtol=2e-3, atol=5e-3), "bf16 path mismatch"
    assert jnp.allclose(t_new, t_ref, rtol=1e-5, atol=1e-5), "t mismatch (bf16)"

    # 2) Full-f32 path with a ragged class count and tc=128: the last class tile is
    #    a partial block (masked writeback), no padding copies anywhere.
    C2 = 200
    weight2 = weight[:, :C2]
    label2 = jnp.minimum(label, C2 - 1)
    out2, t2 = curricular_face(x, label2, weight2, t0, tc=128,
                               compute_dtype=jnp.float32)
    out2 = jax.block_until_ready(out2)
    ref2, t2_ref = _reference(x, label2, weight2, t0, compute_dtype=jnp.float32)
    assert out2.shape == (B, C2)
    assert jnp.allclose(out2, ref2, rtol=1e-5, atol=1e-3), "f32 path mismatch"
    assert jnp.allclose(t2, t2_ref, rtol=1e-5, atol=1e-5), "t mismatch (f32)"

    print("KERNEL_OK")
</pallas_src>

<mosaic_0001>
module attributes {stable_mosaic.version = 11 : i64} {
  func.func @_curricular_kernel(%arg0: i32, %arg1: i32, %arg2: memref<4xi32, #tpu.memory_space<smem>>, %arg3: memref<8x32xbf16, #tpu.memory_space<vmem>>, %arg4: memref<32x256xf32, #tpu.memory_space<vmem>>, %arg5: memref<8x2xf32, #tpu.memory_space<vmem>>, %arg6: memref<8x1xi32, #tpu.memory_space<vmem>>, %arg7: memref<1x1xf32, #tpu.memory_space<smem>>, %arg8: memref<8x256xf32, #tpu.memory_space<vmem>>) attributes {dimension_semantics = [#tpu.dimension_semantics<parallel>, #tpu.dimension_semantics<arbitrary>], iteration_bounds = array<i64: 2, 2>, scalar_prefetch = 1 : i64, scratch_operands = 0 : i64, tpu.core_type = #tpu.core_type<tc>, window_params = [{transform_indices = @transform_0, window_bounds = array<i64: 8, 32>}, {transform_indices = @transform_1, window_bounds = array<i64: 32, 256>}, {transform_indices = @transform_2, window_bounds = array<i64: 8, 2>}, {transform_indices = @transform_3, window_bounds = array<i64: 8, 1>}, {transform_indices = @transform_4, window_bounds = array<i64: 1, 1>}, {transform_indices = @transform_5, window_bounds = array<i64: 8, 256>}]} {
    %c0 = arith.constant 0 : index
    %c0_0 = arith.constant 0 : index
    %0 = vector.load %arg3[%c0, %c0_0] : memref<8x32xbf16, #tpu.memory_space<vmem>>, vector<8x32xbf16>
    %c0_1 = arith.constant 0 : index
    %c0_2 = arith.constant 0 : index
    %1 = vector.load %arg5[%c0_1, %c0_2] : memref<8x2xf32, #tpu.memory_space<vmem>>, vector<8x2xf32>
    %2 = vector.extract_strided_slice %1 {offsets = [0, 0], sizes = [8, 1], strides = [1, 1]} : vector<8x2xf32> to vector<8x1xf32>
    %3 = vector.extract_strided_slice %1 {offsets = [0, 1], sizes = [8, 1], strides = [1, 1]} : vector<8x2xf32> to vector<8x1xf32>
    %c0_3 = arith.constant 0 : index
    %c0_4 = arith.constant 0 : index
    %4 = memref.load %arg7[%c0_3, %c0_4] : memref<1x1xf32, #tpu.memory_space<smem>>
    %c0_5 = arith.constant 0 : index
    %c0_6 = arith.constant 0 : index
    %5 = vector.load %arg4[%c0_5, %c0_6] : memref<32x256xf32, #tpu.memory_space<vmem>>, vector<32x128xf32>
    %6 = arith.truncf %5 : vector<32x128xf32> to vector<32x128xbf16>
    %cst = arith.constant dense<0.000000e+00> : vector<8x128xf32>
    %7 = tpu.matmul %0, %6, %cst {dimension_numbers = #tpu.dot_dimension_numbers<[1], [0], [0], [1], [0, 0, 1, 1], [], []>} : vector<8x32xbf16>, vector<32x128xbf16>, vector<8x128xf32> -> vector<8x128xf32>
    %cst_7 = arith.constant -1.000000e+00 : f32
    %cst_8 = arith.constant 1.000000e+00 : f32
    %8 = vector.broadcast %cst_7 : f32 to vector<8x128xf32>
    %9 = arith.maximumf %8, %7 : vector<8x128xf32>
    %10 = vector.broadcast %cst_8 : f32 to vector<8x128xf32>
    %11 = arith.minimumf %10, %9 : vector<8x128xf32>
    %12 = vector.broadcast %2 : vector<8x1xf32> to vector<8x128xf32>
    %13 = arith.cmpf ogt, %11, %12 : vector<8x128xf32>
    %14 = vector.broadcast %4 : f32 to vector<8x128xf32>
    %15 = arith.addf %14, %11 : vector<8x128xf32>
    %16 = arith.mulf %11, %15 : vector<8x128xf32>
    %17 = arith.select %13, %16, %11 : vector<8x128xi1>, vector<8x128xf32>
    %cst_9 = arith.constant 6.400000e+01 : f32
    %18 = vector.broadcast %cst_9 : f32 to vector<8x128xf32>
    %19 = arith.mulf %17, %18 : vector<8x128xf32>
    %c0_10 = arith.constant 0 : index
    %c0_11 = arith.constant 0 : index
    %20 = vector.load %arg8[%c0_10, %c0_11] : memref<8x256xf32, #tpu.memory_space<vmem>>, vector<8x128xf32>
    tpu.vector_store %arg8[%c0_10, %c0_11], %19 {strides = array<i32>} : memref<8x256xf32, #tpu.memory_space<vmem>>, vector<8x128xf32>,
    %c0_12 = arith.constant 0 : index
    %c128 = arith.constant 128 : index
    %21 = vector.load %arg4[%c0_12, %c128] : memref<32x256xf32, #tpu.memory_space<vmem>>, vector<32x128xf32>
    %22 = arith.truncf %21 : vector<32x128xf32> to vector<32x128xbf16>
    %cst_13 = arith.constant dense<0.000000e+00> : vector<8x128xf32>
    %23 = tpu.matmul %0, %22, %cst_13 {dimension_numbers = #tpu.dot_dimension_numbers<[1], [0], [0], [1], [0, 0, 1, 1], [], []>} : vector<8x32xbf16>, vector<32x128xbf16>, vector<8x128xf32> -> vector<8x128xf32>
    %cst_14 = arith.constant -1.000000e+00 : f32
    %cst_15 = arith.constant 1.000000e+00 : f32
    %24 = vector.broadcast %cst_14 : f32 to vector<8x128xf32>
    %25 = arith.maximumf %24, %23 : vector<8x128xf32>
    %26 = vector.broadcast %cst_15 : f32 to vector<8x128xf32>
    %27 = arith.minimumf %26, %25 : vector<8x128xf32>
    %28 = vector.broadcast %2 : vector<8x1xf32> to vector<8x128xf32>
    %29 = arith.cmpf ogt, %27, %28 : vector<8x128xf32>
    %30 = vector.broadcast %4 : f32 to vector<8x128xf32>
    %31 = arith.addf %30, %27 : vector<8x128xf32>
    %32 = arith.mulf %27, %31 : vector<8x128xf32>
    %33 = arith.select %29, %32, %27 : vector<8x128xi1>, vector<8x128xf32>
    %cst_16 = arith.constant 6.400000e+01 : f32
    %34 = vector.broadcast %cst_16 : f32 to vector<8x128xf32>
    %35 = arith.mulf %33, %34 : vector<8x128xf32>
    %c0_17 = arith.constant 0 : index
    %c128_18 = arith.constant 128 : index
    %36 = vector.load %arg8[%c0_17, %c128_18] : memref<8x256xf32, #tpu.memory_space<vmem>>, vector<8x128xf32>
    tpu.vector_store %arg8[%c0_17, %c128_18], %35 {strides = array<i32>} : memref<8x256xf32, #tpu.memory_space<vmem>>, vector<8x128xf32>,
    %c2_i32 = arith.constant 2 : i32
    %37 = arith.muli %arg0, %c2_i32 : i32
    %38 = arith.addi %37, %arg1 : i32
    %39 = arith.index_cast %38 : i32 to index
    %40 = memref.load %arg2[%39] : memref<4xi32, #tpu.memory_space<smem>>
    %c0_i32 = arith.constant 0 : i32
    %41 = arith.cmpi ne, %40, %c0_i32 : i32
    %42 = arith.extui %41 : i1 to i32
    %c0_i32_19 = arith.constant 0 : i32
    %43 = arith.cmpi ne, %42, %c0_i32_19 : i32
    scf.if %43 {
      %44 = tpu.iota {dimensions = array<i32: 1>} : vector<8x256xi32>
      %c0_20 = arith.constant 0 : index
      %c0_21 = arith.constant 0 : index
      %45 = vector.load %arg6[%c0_20, %c0_21] : memref<8x1xi32, #tpu.memory_space<vmem>>, vector<8x1xi32>
      %c256_i32 = arith.constant 256 : i32
      %46 = arith.muli %arg0, %c256_i32 : i32
      %47 = vector.broadcast %46 : i32 to vector<8x1xi32>
      %48 = arith.subi %45, %47 : vector<8x1xi32>
      %49 = vector.broadcast %48 : vector<8x1xi32> to vector<8x256xi32>
      %50 = arith.cmpi eq, %44, %49 : vector<8x256xi32>
      %cst_22 = arith.constant 6.400000e+01 : f32
      %51 = vector.broadcast %cst_22 : f32 to vector<8x1xf32>
      %52 = arith.mulf %3, %51 : vector<8x1xf32>
      %c0_23 = arith.constant 0 : index
      %c0_24 = arith.constant 0 : index
      %53 = vector.load %arg8[%c0_23, %c0_24] : memref<8x256xf32, #tpu.memory_space<vmem>>, vector<8x256xf32>
      %54 = vector.shape_cast %52 : vector<8x1xf32> to vector<8x1xf32>
      %55 = vector.broadcast %54 : vector<8x1xf32> to vector<8x256xf32>
      %56 = arith.select %50, %55, %53 : vector<8x256xi1>, vector<8x256xf32>
      %c0_25 = arith.constant 0 : index
      %c0_26 = arith.constant 0 : index
      %57 = vector.load %arg8[%c0_25, %c0_26] : memref<8x256xf32, #tpu.memory_space<vmem>>, vector<8x256xf32>
      tpu.vector_store %arg8[%c0_25, %c0_26], %56 {strides = array<i32>} : memref<8x256xf32, #tpu.memory_space<vmem>>, vector<8x256xf32>,
    } else {
    }
    return
  }
  func.func @transform_0(%arg0: i32, %arg1: i32, %arg2: memref<4xi32, #tpu.memory_space<smem>>) -> (i32, i32) {
    %c0_i32 = arith.constant 0 : i32
    %c0_i32_0 = arith.constant 0 : i32
    return %arg1, %c0_i32 : i32, i32
  }
  func.func @transform_1(%arg0: i32, %arg1: i32, %arg2: memref<4xi32, #tpu.memory_space<smem>>) -> (i32, i32) {
    %c0_i32 = arith.constant 0 : i32
    %c0_i32_0 = arith.constant 0 : i32
    return %c0_i32, %arg0 : i32, i32
  }
  func.func @transform_2(%arg0: i32, %arg1: i32, %arg2: memref<4xi32, #tpu.memory_space<smem>>) -> (i32, i32) {
    %c0_i32 = arith.constant 0 : i32
    %c0_i32_0 = arith.constant 0 : i32
    return %arg1, %c0_i32 : i32, i32
  }
  func.func @transform_3(%arg0: i32, %arg1: i32, %arg2: memref<4xi32, #tpu.memory_space<smem>>) -> (i32, i32) {
    %c0_i32 = arith.constant 0 : i32
    %c0_i32_0 = arith.constant 0 : i32
    return %arg1, %c0_i32 : i32, i32
  }
  func.func @transform_4(%arg0: i32, %arg1: i32, %arg2: memref<4xi32, #tpu.memory_space<smem>>) -> (i32, i32) {
    %c0_i32 = arith.constant 0 : i32
    %c0_i32_0 = arith.constant 0 : i32
    %c0_i32_1 = arith.constant 0 : i32
    return %c0_i32, %c0_i32_0 : i32, i32
  }
  func.func @transform_5(%arg0: i32, %arg1: i32, %arg2: memref<4xi32, #tpu.memory_space<smem>>) -> (i32, i32) {
    %c0_i32 = arith.constant 0 : i32
    return %arg1, %arg0 : i32, i32
  }
}

</mosaic_0001>

<llo_original>
// kernel: tpu_custom_call.1
$region0: #{tpu_custom_call.1}
  #allocation0 [shape = 'u32[]', space=smem, size = 0x4, offset = 0x4, fixed_abs, tag = 'smem constant byte address 0x4 - core index']
  #allocation1 [shape = 'u32[144,128]{1,0:T(1,128)}', space=vmem, size = 0x12000, scoped, tag = 'internal scratch']
  #allocation2 [shape = 's32[1]{0}', space=sflag, size = 0x4, scoped, tag = 'scoped memory for tpu_custom_call.1']
  #allocation3 [shape = 'u8[512]{0}', space=smem, size = 0x200, scoped, tag = 'prefetched SMEM operand 0']
  #allocation4 [shape = 'f32[1,1]{1,0:T(1,128)S(6)}', space=smem, size = 0x200, scoped, tag = 'scoped memory for tpu_custom_call.1']
  %s0 = inlined_call_operand.vmem [shape: s32[4], index: 0, kind: input, shape index: {}]
  %s1 = inlined_call_operand.vmem [shape: bf16[16,32], index: 1, kind: input, shape index: {}]
  %s2 = inlined_call_operand.hbm [shape: f32[32,512], index: 2, kind: input, shape index: {}]
  %s3 = inlined_call_operand.vmem [shape: f32[16,2], index: 3, kind: input, shape index: {}]
  %s4 = inlined_call_operand.vmem [shape: s32[16,1], index: 4, kind: input, shape index: {}]
  %s5 = inlined_call_operand.<no memory space> [shape: f32[1,1], index: 5, kind: input, shape index: {}]
  %s6 = inlined_call_operand.hbm [shape: f32[16,512], index: 6, kind: output, shape index: {}]
  %s7 = sld [smem:[#allocation0]]
  $region61: #{tpu_custom_call.1} parent=0
    _
  %s9 = ssub.s32 1, %s7
  %s10 = scalar_select 0, %s9, %s7
  %s11 = sshll.u32 %s0, 4
  %s12 = int_to_ptr.vmem [resolvable:$true] %s11
  %14 = dma.vmem_to_smem %s12, 16, [#allocation3], [#allocation2]
  %15 = sst [smem:[#allocation4]] %s5
  %16 = dma.done [#allocation2], 16
  %17 = sfence
  $region1: #{tpu_custom_call.1} parent=0
    #allocation5 [shape = 'u8[65536]{0}', space=vmem, size = 0x10000, scoped, tag = 'input window, operand 2']
    #allocation6 [shape = 's32[2]{0}', space=sflag, size = 0x8, scoped, tag = 'scoped memory for tpu_custom_call.1']
    #allocation7 [shape = 's32[2]{0}', space=sflag, size = 0x8, scoped, tag = 'scoped memory for tpu_custom_call.1']
    #allocation8 [shape = 'u8[16384]{0}', space=vmem, size = 0x4000, scoped, tag = 'output window, operand 0']
    %18 = vsyncpa [#allocation6], 0
    %s19 = scalar_lea.sflag [#allocation6], 1
    %20 = vsyncpa %s19, 0
    %21 = vsyncpa [#allocation7], 0
    %s22 = scalar_lea.sflag [#allocation7], 1
    %23 = vsyncpa %s22, 0
    loop: start=0, step=1, limit=6
    $region2: #{tpu_custom_call.1} parent=1 // loop_pre_header
      _
    $region3: #{tpu_custom_call.1} parent=1 // loop_header
      %s25 = sphi 0, %s29
      %p26 = scmp.ge.s32.totalorder %s25, 6
      %s32 = sphi 0, %s44
      %s33 = sphi 0, %s40
      %s34 = sphi 0, %s32
      %s35 = sphi 0, %s33
      %s36 = sphi 0, %s34
      %s37 = sphi 0, %s35
      %s47 = sphi 0, %s49
      %s50 = sphi 0, %s47
      %s51 = sphi 0, %s50
      %s67 = sphi 0, %s51
      %s73 = sphi 0, %s75
      %s76 = sphi 0, %s73
      %s77 = sphi 0, %s76
      %s93 = sphi 0, %s77
      %s99 = sphi 0, %s101
      %s102 = sphi 0, %s99
      %s103 = sphi 0, %s102
      %s119 = sphi 0, %s103
      %s125 = sphi 0, %s127
      %s128 = sphi 0, %s125
      %s129 = sphi 0, %s128
      %s145 = sphi 0, %s129
      %s149 = sphi 0, %s149
      %s151 = sphi 0, %s149
      %s152 = sphi 0, %s151
      %s166 = sphi 0, %s152
      %s174 = sphi 0, %s176
      %s177 = sphi 0, %s174
      %s178 = sphi 0, %s177
      %s194 = sphi 0, %s178
    $region4: #{tpu_custom_call.1} parent=1 // loop_header_branch
      %28 = sbr.rel (%p26) target = $region8
    $region5: #{tpu_custom_call.1} parent=1 // loop_body
      %s30 = ssub.s32 %s25, 1
      %s31 = ssub.s32 %s25, 2
      %s38 = sadd.s32 1, %s33
      %p39 = scmp.ge.s32.totalorder %s38, 2
      %s40 = scalar_select %p39, 0, %s38
      %s41 = sadd.s32 1, %s32
      %s42 = scalar_select %p39, %s41, %s32
      %p43 = scmp.ge.s32.totalorder %s42, 2
      %s44 = scalar_select %p43, 0, %s42
      %s45 = ssub.s32 %s33, %s40
      %p46 = scmp.eq.s32.totalorder %s45, 0
      %s48 = sadd.s32 %s47, 1
      %s49 = scalar_select %p46, %s47, %s48
      %p52 = pneg %p46
      %p53 = scmp.eq.s32.totalorder %s25, 3
      %p54 = por %p52, %p53
      %p55 = scmp.ne.s32.totalorder %s47, %s50
      %p56 = scmp.eq.s32.totalorder %s25, 0
      %p57 = por %p55, %p56
      %p58 = scmp.ne.s32.totalorder %s47, %s50
      %p59 = scmp.eq.s32.totalorder %s30, 3
      %p60 = por %p58, %p59
      %p61 = scmp.ne.s32.totalorder %s50, %s51
      %p62 = scmp.eq.s32.totalorder %s30, 0
      %p63 = por %p61, %p62
      %p64 = scmp.ne.s32.totalorder %s50, %s51
      %p65 = scmp.eq.s32.totalorder %s31, 3
      %p66 = por %p64, %p65
      %p68 = scmp.ne.s32.totalorder %s51, %s67
      %p69 = scmp.eq.s32.totalorder %s31, 0
      %p70 = por %p68, %p69
      %s71 = ssub.s32 %s32, %s44
      %p72 = scmp.eq.s32.totalorder %s71, 0
      %s74 = sadd.s32 %s73, 1
      %s75 = scalar_select %p72, %s73, %s74
      %p78 = pneg %p72
      %p79 = scmp.eq.s32.totalorder %s25, 3
      %p80 = por %p78, %p79
      %p81 = scmp.ne.s32.totalorder %s73, %s76
      %p82 = scmp.eq.s32.totalorder %s25, 0
      %p83 = por %p81, %p82
      %p84 = scmp.ne.s32.totalorder %s73, %s76
      %p85 = scmp.eq.s32.totalorder %s30, 3
      %p86 = por %p84, %p85
      %p87 = scmp.ne.s32.totalorder %s76, %s77
      %p88 = scmp.eq.s32.totalorder %s30, 0
      %p89 = por %p87, %p88
      %p90 = scmp.ne.s32.totalorder %s76, %s77
      %p91 = scmp.eq.s32.totalorder %s31, 3
      %p92 = por %p90, %p91
      %p94 = scmp.ne.s32.totalorder %s77, %s93
      %p95 = scmp.eq.s32.totalorder %s31, 0
      %p96 = por %p94, %p95
      %s97 = ssub.s32 %s33, %s40
      %p98 = scmp.eq.s32.totalorder %s97, 0
      %s100 = sadd.s32 %s99, 1
      %s101 = scalar_select %p98, %s99, %s100
      %p104 = pneg %p98
      %p105 = scmp.eq.s32.totalorder %s25, 3
      %p106 = por %p104, %p105
      %p107 = scmp.ne.s32.totalorder %s99, %s102
      %p108 = scmp.eq.s32.totalorder %s25, 0
      %p109 = por %p107, %p108
      %p110 = scmp.ne.s32.totalorder %s99, %s102
      %p111 = scmp.eq.s32.totalorder %s30, 3
      %p112 = por %p110, %p111
      %p113 = scmp.ne.s32.totalorder %s102, %s103
      %p114 = scmp.eq.s32.totalorder %s30, 0
      %p115 = por %p113, %p114
      %p116 = scmp.ne.s32.totalorder %s102, %s103
      %p117 = scmp.eq.s32.totalorder %s31, 3
      %p118 = por %p116, %p117
      %p120 = scmp.ne.s32.totalorder %s103, %s119
      %p121 = scmp.eq.s32.totalorder %s31, 0
      %p122 = por %p120, %p121
      %s123 = ssub.s32 %s33, %s40
      %p124 = scmp.eq.s32.totalorder %s123, 0
      %s126 = sadd.s32 %s125, 1
      %s127 = scalar_select %p124, %s125, %s126
      %p130 = pneg %p124
      %p131 = scmp.eq.s32.totalorder %s25, 3
      %p132 = por %p130, %p131
      %p133 = scmp.ne.s32.totalorder %s125, %s128
      %p134 = scmp.eq.s32.totalorder %s25, 0
      %p135 = por %p133, %p134
      %p136 = scmp.ne.s32.totalorder %s125, %s128
      %p137 = scmp.eq.s32.totalorder %s30, 3
      %p138 = por %p136, %p137
      %p139 = scmp.ne.s32.totalorder %s128, %s129
      %p140 = scmp.eq.s32.totalorder %s30, 0
      %p141 = por %p139, %p140
      %p142 = scmp.ne.s32.totalorder %s128, %s129
      %p143 = scmp.eq.s32.totalorder %s31, 3
      %p144 = por %p142, %p143
      %p146 = scmp.ne.s32.totalorder %s129, %s145
      %p147 = scmp.eq.s32.totalorder %s31, 0
      %p148 = por %p146, %p147
      %s150 = sadd.s32 %s149, 1
      %p153 = scmp.eq.s32.totalorder %s25, 3
      %p154 = scmp.ne.s32.totalorder %s149, %s151
      %p155 = scmp.eq.s32.totalorder %s25, 0
      %p156 = por %p154, %p155
      %p157 = scmp.ne.s32.totalorder %s149, %s151
      %p158 = scmp.eq.s32.totalorder %s30, 3
      %p159 = por %p157, %p158
      %p160 = scmp.ne.s32.totalorder %s151, %s152
      %p161 = scmp.eq.s32.totalorder %s30, 0
      %p162 = por %p160, %p161
      %p163 = scmp.ne.s32.totalorder %s151, %s152
      %p164 = scmp.eq.s32.totalorder %s31, 3
      %p165 = por %p163, %p164
      %p167 = scmp.ne.s32.totalorder %s152, %s166
      %p168 = scmp.eq.s32.totalorder %s31, 0
      %p169 = por %p167, %p168
      %s170 = ssub.s32 %s33, %s40
      %s171 = ssub.s32 %s32, %s44
      %s172 = sor.u32 %s170, %s171
      %p173 = scmp.eq.s32.totalorder %s172, 0
      %s175 = sadd.s32 %s174, 1
      %s176 = scalar_select %p173, %s174, %s175
      %p179 = pneg %p173
      %p180 = scmp.eq.s32.totalorder %s25, 3
      %p181 = por %p179, %p180
      %p182 = scmp.ne.s32.totalorder %s174, %s177
      %p183 = scmp.eq.s32.totalorder %s25, 0
      %p184 = por %p182, %p183
      %p185 = scmp.ne.s32.totalorder %s174, %s177
      %p186 = scmp.eq.s32.totalorder %s30, 3
      %p187 = por %p185, %p186
      %p188 = scmp.ne.s32.totalorder %s177, %s178
      %p189 = scmp.eq.s32.totalorder %s30, 0
      %p190 = por %p188, %p189
      %p191 = scmp.ne.s32.totalorder %s177, %s178
      %p192 = scmp.eq.s32.totalorder %s31, 3
      %p193 = por %p191, %p192
      %p195 = scmp.ne.s32.totalorder %s178, %s194
      %p196 = scmp.eq.s32.totalorder %s31, 0
      %p197 = por %p195, %p196
      %p198 = scmp.le.s32.totalorder 1, %s25
      %p199 = scmp.lt.s32.totalorder %s25, 5
      %p200 = pnand %p198, %p199
      %p201 = pneg %p200
      // Predicated region
      $region9: #{tpu_custom_call.1} parent=5 // pred_check
        _
      $region10: #{tpu_custom_call.1} parent=5 // pred_check_branch
        %203 = sbr.rel (%p200) target = $region12
      $region11: #{tpu_custom_call.1} parent=5 // pred_region
        %s204 = ssub.s32 %s25, 1
        // Predicated region
        $region13: #{tpu_custom_call.1} parent=11 // pred_check
          %p205 = pneg %p162
        $region14: #{tpu_custom_call.1} parent=11 // pred_check_branch
          %207 = sbr.rel (%p205) target = $region16
        $region15: #{tpu_custom_call.1} parent=11 // pred_region
          _
        $region16: #{tpu_custom_call.1} parent=11 // pred_fallthru
          _
      $region12: #{tpu_custom_call.1} parent=5 // pred_fallthru
        _
      %p208 = scmp.lt.s32.totalorder %s25, 4
      // Predicated region
      $region17: #{tpu_custom_call.1} parent=5 // pred_check
        %p209 = pneg %p208
      $region18: #{tpu_custom_call.1} parent=5 // pred_check_branch
        %211 = sbr.rel (%p209) target = $region20
      $region19: #{tpu_custom_call.1} parent=5 // pred_region
        // Predicated region
        $region21: #{tpu_custom_call.1} parent=19 // pred_check
          %p212 = pneg %p57
        $region22: #{tpu_custom_call.1} parent=19 // pred_check_branch
          %214 = sbr.rel (%p212) target = $region24
        $region23: #{tpu_custom_call.1} parent=19 // pred_region
          %p215 = scmp.lt.s32.totalorder %s33, 1
          %s216 = scalar_select %p215, %s33, 1
          %s217 = smul.addr %s216, 4
          %s218 = scalar_lea.vmem %s1, %s217
        $region24: #{tpu_custom_call.1} parent=19 // pred_fallthru
          _
        // Predicated region
        $region25: #{tpu_custom_call.1} parent=19 // pred_check
          %p219 = pneg %p83
        $region26: #{tpu_custom_call.1} parent=19 // pred_check_branch
          %221 = sbr.rel (%p219) target = $region28
        $region27: #{tpu_custom_call.1} parent=19 // pred_region
          %s222 = sand.u32 %s73, 1
          %s223 = scalar_lea.sflag [#allocation6], %s222
          %s224 = sand.u32 %s73, 1
          %s225 = smul.addr %s224, 64
          %s226 = scalar_lea.vmem [#allocation5], %s225
          %s227 = smul.u32 2, %s32
          %s229 = ssub.s32 1024, 1024
          %230 = vsyncadd %s223, %s229
          %s231 = smul.addr %s227, 128
          %s232 = scalar_lea.hbm %s2, %s231
          %s233 = sshll.u32 %s226, 4
          %s234 = int_to_ptr.vmem [resolvable:$true] %s233
          %239 = dma.hbm_to_vmem [thread:$0]  %s232, 1024, %s234, %s223, 512, 256, 16
        $region28: #{tpu_custom_call.1} parent=19 // pred_fallthru
          _
        // Predicated region
        $region29: #{tpu_custom_call.1} parent=19 // pred_check
          %p240 = pneg %p109
        $region30: #{tpu_custom_call.1} parent=19 // pred_check_branch
          %242 = sbr.rel (%p240) target = $region32
        $region31: #{tpu_custom_call.1} parent=19 // pred_region
          %p243 = scmp.lt.s32.totalorder %s33, 1
          %s244 = scalar_select %p243, %s33, 1
          %s245 = smul.addr %s244, 8
          %s246 = scalar_lea.vmem %s3, %s245
        $region32: #{tpu_custom_call.1} parent=19 // pred_fallthru
          _
        // Predicated region
        $region33: #{tpu_custom_call.1} parent=19 // pred_check
          %p247 = pneg %p135
        $region34: #{tpu_custom_call.1} parent=19 // pred_check_branch
          %249 = sbr.rel (%p247) target = $region36
        $region35: #{tpu_custom_call.1} parent=19 // pred_region
          %p250 = scmp.lt.s32.totalorder %s33, 1
          %s251 = scalar_select %p250, %s33, 1
          %s252 = smul.addr %s251, 8
          %s253 = scalar_lea.vmem %s4, %s252
        $region36: #{tpu_custom_call.1} parent=19 // pred_fallthru
          _
      $region20: #{tpu_custom_call.1} parent=5 // pred_fallthru
        _
      %p254 = scmp.le.s32.totalorder 1, %s25
      %p255 = scmp.lt.s32.totalorder %s25, 5
      %p256 = pnand %p254, %p255
      %p257 = pneg %p256
      // Predicated region
      $region37: #{tpu_custom_call.1} parent=5 // pred_check
        _
      $region38: #{tpu_custom_call.1} parent=5 // pred_check_branch
        %259 = sbr.rel (%p256) target = $region40
      $region39: #{tpu_custom_call.1} parent=5 // pred_region
        %s260 = ssub.s32 %s25, 1
        %s261 = sand.u32 %s76, 1
        %s262 = scalar_lea.sflag [#allocation6], %s261
        %s263 = sand.u32 %s76, 1
        %s264 = smul.addr %s263, 64
        %s265 = scalar_lea.vmem [#allocation5], %s264
        // Predicated region
        $region41: #{tpu_custom_call.1} parent=39 // pred_check
          %p266 = pneg %p89
        $region42: #{tpu_custom_call.1} parent=39 // pred_check_branch
          %268 = sbr.rel (%p266) target = $region44
        $region43: #{tpu_custom_call.1} parent=39 // pred_region
          %269 = dma.done %s262, 1024
        $region44: #{tpu_custom_call.1} parent=39 // pred_fallthru
          _
        %p270 = scmp.lt.s32.totalorder %s35, 1
        %s271 = scalar_select %p270, %s35, 1
        %s272 = smul.addr %s271, 4
        %s273 = scalar_lea.vmem %s1, %s272
        %p274 = pneg %p63
        %p275 = pneg %p60
        %s276 = sand.u32 %s76, 1
        %s277 = scalar_lea.sflag [#allocation6], %s276
        %s278 = sand.u32 %s76, 1
        %s279 = smul.addr %s278, 64
        %s280 = scalar_lea.vmem [#allocation5], %s279
        %p281 = pneg %p89
        %p282 = pneg %p86
        %p283 = scmp.lt.s32.totalorder %s35, 1
        %s284 = scalar_select %p283, %s35, 1
        %s285 = smul.addr %s284, 8
        %s286 = scalar_lea.vmem %s3, %s285
        %p287 = pneg %p115
        %p288 = pneg %p112
        %p289 = scmp.lt.s32.totalorder %s35, 1
        %s290 = scalar_select %p289, %s35, 1
        %s291 = smul.addr %s290, 8
        %s292 = scalar_lea.vmem %s4, %s291
        %p293 = pneg %p141
        %p294 = pneg %p138
        %p295 = pneg %p162
        %p296 = pneg %p159
        %p297 = pneg %p190
        %p298 = pneg %p187
        %s299 = sand.u32 %s177, 1
        %s300 = scalar_lea.sflag [#allocation7], %s299
        %s301 = sand.u32 %s177, 1
        %s302 = smul.addr %s301, 16
        %s303 = scalar_lea.vmem [#allocation8], %s302
        %p304 = scmp.lt.s32.totalorder %s35, 1
        %s305 = scalar_select %p304, %s35, 1
        %s306 = smul.addr %s305, 4
        %s307 = scalar_lea.vmem %s1, %s306
        %s308 = smul.u32 2, %s34
        %p309 = scmp.lt.s32.totalorder %s35, 1
        %s310 = scalar_select %p309, %s35, 1
        %s311 = smul.addr %s310, 8
        %s312 = scalar_lea.vmem %s3, %s311
        %p313 = scmp.lt.s32.totalorder %s35, 1
        %s314 = scalar_select %p313, %s35, 1
        %s315 = smul.addr %s314, 8
        %s316 = scalar_lea.vmem %s4, %s315
        %s317 = smul.u32 2, %s34
        %v319 = vld [vmem:[%s307] sm:$0xf]
        %v320 = vld [vmem:[%s312] sm:$0xff]
        %s321 = sld [smem:[#allocation4]]
        %v322 = vld [vmem:[%s265] sm:$0xff]
        %v323 = vld [vmem:[%s265 + $0x10] sm:$0xff]
        %v324 = vld [vmem:[%s265 + $0x20] sm:$0xff]
        %v325 = vld [vmem:[%s265 + $0x30] sm:$0xff]
        %v326 = vpack.c.bf16 %v323, %v322
        %v327 = vpack.c.bf16 %v325, %v324
        %vm328 = vcmask 261120
        %v330 = vsel %vm328, %v319, 0
        %332 = vmatprep.subr.bf16.mxu0 0
        %333 = vmatpush1.bf16.msra.mxu0 0
        %334 = vmatprep.subr.bf16.mxu0 0
        %335 = vmatpush1.bf16.msra.mxu0 0
        %336 = vmatprep.subr.bf16.mxu0 0
        %337 = vmatpush1.bf16.msra.mxu0 0
        %338 = vmatprep.subr.bf16.mxu0 0
        %339 = vmatpush1.bf16.msra.mxu0 0
        %340 = vmatprep.subr.bf16.mxu0 0
        %341 = vmatpush1.bf16.msra.mxu0 0
        %342 = vmatprep.subr.bf16.mxu0 0
        %343 = vmatpush1.bf16.msra.mxu0 0
        %344 = vmatprep.subr.bf16.mxu0 0
        %345 = vmatpush1.bf16.msra.mxu0 %v327
        %346 = vmatprep.subr.bf16.mxu0 0
        %347 = vmatpush1.bf16.msra.mxu0 %v326
        %348 = vmatprep.subr.bf16.mxu0 0
        %349 = vmatpush2.bf16.msra.mxu0 0
        %350 = vmatprep.subr.bf16.mxu0 0
        %351 = vmatpush2.bf16.msra.mxu0 0
        %352 = vmatprep.subr.bf16.mxu0 0
        %353 = vmatpush2.bf16.msra.mxu0 0
        %354 = vmatprep.subr.bf16.mxu0 0
        %355 = vmatpush2.bf16.msra.mxu0 0
        %356 = vmatprep.subr.bf16.mxu0 0
        %357 = vmatpush2.bf16.msra.mxu0 0
        %358 = vmatprep.subr.bf16.mxu0 0
        %359 = vmatpush2.bf16.msra.mxu0 0
        %360 = vmatprep.subr.bf16.mxu0 0
        %361 = vmatpush2.bf16.msra.mxu0 0
        %362 = vmatprep.subr.bf16.mxu0 0
        %363 = vmatpush2.bf16.msra.mxu0 0
        %364 = vmatprep.mubr.bf16.mxu0 0
        %365 = vmatmul.mubr.bf16.gmra.mxu0 %v330
        %v366 = vpop.f32.mrf.mxu0
        %v367 = vadd.f32 0.0, %v366
        %v368 = vpop.f32.mrf.mxu0
        %v369 = vpop.f32.mrf.mxu0
        %v370 = vpop.f32.mrf.mxu0
        %371 = vdwg.mxu0
        %v372 = vmax.f32 %v367, -1.0
        %v373 = vmin.f32 %v372, 1.0
        %375 = vset.pattern.permute.xlu0 0
        %376 = vperm.xlu0 %375, %v320
        %v377 = vpop.permute.xlu0 %376
        %vm379 = vcmp.gt.f32.partialorder %v373, %v377
        %v380 = vstv %s321
        %v381 = vadd.f32 %v380, %v373
        %v382 = vmul.f32 %v373, %v381
        %v383 = vsel %vm379, %v382, %v373
        %v384 = vmul.f32 %v383, 64.0
        %385 = vst [vmem:[%s303] sm:$0xff] %v384
        %v386 = vld [vmem:[%s265 + $0x8] sm:$0xff]
        %v387 = vld [vmem:[%s265 + $0x18] sm:$0xff]
        %v388 = vld [vmem:[%s265 + $0x28] sm:$0xff]
        %v389 = vld [vmem:[%s265 + $0x38] sm:$0xff]
        %v390 = vpack.c.bf16 %v387, %v386
        %v391 = vpack.c.bf16 %v389, %v388
        %392 = vmatprep.subr.bf16.mxu0 0
        %393 = vmatpush1.bf16.msra.mxu0 0
        %394 = vmatprep.subr.bf16.mxu0 0
        %395 = vmatpush1.bf16.msra.mxu0 0
        %396 = vmatprep.subr.bf16.mxu0 0
        %397 = vmatpush1.bf16.msra.mxu0 0
        %398 = vmatprep.subr.bf16.mxu0 0
        %399 = vmatpush1.bf16.msra.mxu0 0
        %400 = vmatprep.subr.bf16.mxu0 0
        %401 = vmatpush1.bf16.msra.mxu0 0
        %402 = vmatprep.subr.bf16.mxu0 0
        %403 = vmatpush1.bf16.msra.mxu0 0
        %404 = vmatprep.subr.bf16.mxu0 0
        %405 = vmatpush1.bf16.msra.mxu0 %v391
        %406 = vmatprep.subr.bf16.mxu0 0
        %407 = vmatpush1.bf16.msra.mxu0 %v390
        %408 = vmatprep.subr.bf16.mxu0 0
        %409 = vmatpush2.bf16.msra.mxu0 0
        %410 = vmatprep.subr.bf16.mxu0 0
        %411 = vmatpush2.bf16.msra.mxu0 0
        %412 = vmatprep.subr.bf16.mxu0 0
        %413 = vmatpush2.bf16.msra.mxu0 0
        %414 = vmatprep.subr.bf16.mxu0 0
        %415 = vmatpush2.bf16.msra.mxu0 0
        %416 = vmatprep.subr.bf16.mxu0 0
        %417 = vmatpush2.bf16.msra.mxu0 0
        %418 = vmatprep.subr.bf16.mxu0 0
        %419 = vmatpush2.bf16.msra.mxu0 0
        %420 = vmatprep.subr.bf16.mxu0 0
        %421 = vmatpush2.bf16.msra.mxu0 0
        %422 = vmatprep.subr.bf16.mxu0 0
        %423 = vmatpush2.bf16.msra.mxu0 0
        %424 = vmatprep.mubr.bf16.mxu0 0
        %425 = vmatmul.mubr.bf16.gmra.mxu0 %v330
        %v426 = vpop.f32.mrf.mxu0
        %v427 = vadd.f32 0.0, %v426
        %v428 = vpop.f32.mrf.mxu0
        %v429 = vpop.f32.mrf.mxu0
        %v430 = vpop.f32.mrf.mxu0
        %431 = vdwg.mxu0
        %v432 = vmax.f32 %v427, -1.0
        %v433 = vmin.f32 %v432, 1.0
        %vm434 = vcmp.gt.f32.partialorder %v433, %v377
        %v435 = vadd.f32 %v380, %v433
        %v436 = vmul.f32 %v433, %v435
        %v437 = vsel %vm434, %v436, %v433
        %v438 = vmul.f32 %v437, 64.0
        %439 = vst [vmem:[%s303 + $0x8] sm:$0xff] %v438
        %s440 = smul.u32 %s34, 2
        %s441 = sadd.s32 %s440, %s35
        %s442 = sld [smem:[#allocation3 + %s441]]
        %p443 = scmp.ne.s32.totalorder %s442, 0
        // Predicated region
        $region45: #{tpu_custom_call.1} parent=39 // pred_check
          %p444 = pneg %p443
        $region46: #{tpu_custom_call.1} parent=39 // pred_check_branch
          %446 = sbr.rel (%p444) target = $region48
        $region47: #{tpu_custom_call.1} parent=39 // pred_region
          %v447 = vlaneseq
          %v448 = vand.u32 %v447, 127
          %v449 = vadd.s32 %v448, 128
          %v450 = vld [vmem:[%s316] sm:$0xff]
          %s451 = smul.u32 %s34, 256
          %v452 = vstv %s451
          %v453 = vsub.s32 %v450, %v452
          %454 = vset.pattern.permute.xlu0 0
          %455 = vperm.xlu0 %454, %v453
          %v456 = vpop.permute.xlu0 %455
          %vm457 = vcmp.eq.s32.totalorder %v448, %v456
          %vm458 = vcmp.eq.s32.totalorder %v449, %v456
          %v459 = vmul.f32 %v320, 64.0
          %v460 = vld [vmem:[%s303] sm:$0xff]
          %v461 = vld [vmem:[%s303 + $0x8] sm:$0xff]
          %463 = vset.pattern.permute.xlu0 1
          %464 = vperm.xlu0 %463, %v459
          %v465 = vpop.permute.xlu0 %464
          %v467 = vsel %vm457, %v465, %v460
          %v468 = vsel %vm458, %v465, %v461
          %469 = vst [vmem:[%s303] sm:$0xff] %v467
          %470 = vst [vmem:[%s303 + $0x8] sm:$0xff] %v468
        $region48: #{tpu_custom_call.1} parent=39 // pred_fallthru
          _
        %s471 = sand.u32 %s177, 1
        %s472 = scalar_lea.sflag [#allocation7], %s471
        %s473 = sand.u32 %s177, 1
        %s474 = smul.addr %s473, 16
        %s475 = scalar_lea.vmem [#allocation8], %s474
        // Predicated region
        $region49: #{tpu_custom_call.1} parent=39 // pred_check
          %p476 = pneg %p187
        $region50: #{tpu_custom_call.1} parent=39 // pred_check_branch
          %478 = sbr.rel (%p476) target = $region52
        $region51: #{tpu_custom_call.1} parent=39 // pred_region
          %s479 = smul.u32 2, %s34
          %s481 = ssub.s32 256, 256
          %482 = vsyncadd %s472, %s481
          %s483 = smul.addr %s35, 4
          %s484 = sadd.s32 %s479, %s483
          %s485 = smul.addr %s484, 128
          %s486 = scalar_lea.hbm %s6, %s485
          %s488 = sshll.u32 %s475, 4
          %s489 = int_to_ptr.vmem [resolvable:$true] %s488
          %491 = dma.vmem_to_hbm [thread:$0]  %s489, 256, %s486, %s472
        $region52: #{tpu_custom_call.1} parent=39 // pred_fallthru
          _
      $region40: #{tpu_custom_call.1} parent=5 // pred_fallthru
        _
      %p492 = scmp.le.s32.totalorder 2, %s25
      // Predicated region
      $region53: #{tpu_custom_call.1} parent=5 // pred_check
        %p493 = pneg %p492
      $region54: #{tpu_custom_call.1} parent=5 // pred_check_branch
        %495 = sbr.rel (%p493) target = $region56
      $region55: #{tpu_custom_call.1} parent=5 // pred_region
        %s496 = ssub.s32 %s25, 2
        // Predicated region
        $region57: #{tpu_custom_call.1} parent=55 // pred_check
          %p497 = pneg %p193
        $region58: #{tpu_custom_call.1} parent=55 // pred_check_branch
          %499 = sbr.rel (%p497) target = $region60
        $region59: #{tpu_custom_call.1} parent=55 // pred_region
          %s500 = sand.u32 %s178, 1
          %s501 = scalar_lea.sflag [#allocation7], %s500
          %s502 = sand.u32 %s178, 1
          %s503 = smul.addr %s502, 16
          %s504 = scalar_lea.vmem [#allocation8], %s503
          %505 = dma.done %s501, 256
        $region60: #{tpu_custom_call.1} parent=55 // pred_fallthru
          _
      $region56: #{tpu_custom_call.1} parent=5 // pred_fallthru
        _
    $region6: #{tpu_custom_call.1} parent=1 // loop_footer
      %s29 = sadd.s32 1, %s25
    $region7: #{tpu_custom_call.1} parent=1 // loop_footer_branch
      %24 = sbr.rel target = $region3
    $region8: #{tpu_custom_call.1} parent=1 // loop_exit
      _
    %506 = vsyncpa [#allocation6], 1
    %s507 = scalar_lea.sflag [#allocation6], 1
    %508 = vsyncpa %s507, 1
    %509 = vsyncpa [#allocation7], 1
    %s510 = scalar_lea.sflag [#allocation7], 1
    %511 = vsyncpa %s510, 1

</llo_original>
